<compile_context>
chip_gen: v7x
topology: tpu7x:2x2x1
jax: 0.10.0
libtpu: 0.0.40
codegen_flags: <defaults>
</compile_context>

<pallas_src>
import functools

import jax
import jax.numpy as jnp
from jax.experimental import pallas as pl
from jax.experimental.pallas import tpu as pltpu

HIDDEN = 32   # per-branch hidden width (nn.Linear(input, 32))
LANES = 128   # TPU lane width; fused hidden (2*32=64) padded to 128


def _ceil_to(x, m):
    return ((x + m - 1) // m) * m


def _fused_actor_critic_kernel(x_ref, p_ref, out_ref, *, n_obs_pad, out_lanes):
    """One fused forward step on a (tb, n_obs_pad) batch tile.

    Param slab row layout (all section starts are multiples of 8 sublanes):
      [0, n_obs_pad)                 : W1  = [aw1 | cw1 | 0]          (n_obs_pad, 128)
      [n_obs_pad, n_obs_pad + 8)     : row0 = b1 = [ab1 | cb1 | 0]
                                       row1 = b2 = [ab2 | cb2 | 0]
      [n_obs_pad + 8, n_obs_pad+136) : W2  block-diagonal, lane-padded (128, 128)

    Ragged batch tiles: rows past the true batch hold garbage, but rows are
    fully independent and Pallas drops out-of-bounds output writes, so valid
    rows are never contaminated.
    """
    x = x_ref[...]                                           # (tb, n_obs_pad)
    w1 = p_ref[0:n_obs_pad, :]                               # (n_obs_pad, 128)
    b = p_ref[n_obs_pad:n_obs_pad + 8, :]                    # (8, 128)
    w2 = p_ref[n_obs_pad + 8:n_obs_pad + 8 + LANES, :]       # (128, 128)

    # Layer 1: actor & critic fused along lanes, single MXU tile + ReLU.
    h = jnp.maximum(
        jnp.dot(x, w1, preferred_element_type=jnp.float32) + b[0:1, :], 0.0)

    # Layer 2: block-diagonal W2 -> [actor logits | critic value | zeros].
    y = jnp.dot(h, w2, preferred_element_type=jnp.float32) + b[1:2, :]

    # Narrow (lane-masked) store: only [actor | critic | pad] lanes go to HBM.
    out_ref[...] = y[:, 0:out_lanes].astype(out_ref.dtype)


def pack_params(params, n_obs):
    """Pack all weights/biases into one (n_obs_pad + 136, 128) f32 slab (one DMA)."""
    n_actions = params["aw2"].shape[1]
    assert n_actions + 1 <= LANES, "fused layer-2 requires n_actions + 1 <= 128"
    assert 2 * HIDDEN <= LANES
    n_obs_pad = _ceil_to(n_obs, 8)

    # Fused layer-1 weight: [aw1 | cw1 | zeros]; rows >= n_obs are zero so the
    # content of any padded x columns is irrelevant (exact math).
    w1 = jnp.zeros((n_obs_pad, LANES), jnp.float32)
    w1 = w1.at[:n_obs, 0:HIDDEN].set(params["aw1"])
    w1 = w1.at[:n_obs, HIDDEN:2 * HIDDEN].set(params["cw1"])

    # Bias rows: row0 = fused layer-1 bias, row1 = fused layer-2 bias.
    brows = jnp.zeros((8, LANES), jnp.float32)
    brows = brows.at[0, 0:HIDDEN].set(params["ab1"][0])
    brows = brows.at[0, HIDDEN:2 * HIDDEN].set(params["cb1"][0])
    brows = brows.at[1, 0:n_actions].set(params["ab2"][0])
    brows = brows.at[1, n_actions].set(params["cb2"][0, 0])

    # Block-diagonal fused layer-2 weight (zeros elsewhere -> exact math).
    w2 = jnp.zeros((LANES, LANES), jnp.float32)
    w2 = w2.at[0:HIDDEN, 0:n_actions].set(params["aw2"])
    w2 = w2.at[HIDDEN:2 * HIDDEN, n_actions:n_actions + 1].set(params["cw2"])

    return jnp.concatenate([w1, brows, w2], axis=0)


def _xla_forward(x, param_slab, n_actions, n_obs_pad):
    """Fused plain-XLA path for tiny batches (same slab, identical math)."""
    n_obs = x.shape[1]
    w1 = param_slab[:n_obs, :]
    b1 = param_slab[n_obs_pad, :]
    w2 = param_slab[n_obs_pad + 8:n_obs_pad + 8 + LANES, :n_actions + 1]
    b2 = param_slab[n_obs_pad + 1, :n_actions + 1]
    h = jnp.maximum(x @ w1 + b1, 0.0)
    y = h @ w2 + b2
    return y[:, :n_actions], y[:, n_actions:n_actions + 1]


def actor_critic_forward(x, param_slab, n_actions, *, xla_batch_threshold=64):
    """x: (B, n_obs) f32. param_slab: output of pack_params. Returns (actor, critic)."""
    B, n_obs = x.shape
    n_obs_pad = _ceil_to(n_obs, 8)
    out_lanes = _ceil_to(n_actions + 1, 8)
    assert n_actions + 1 <= LANES

    # Tiny batches: pallas_call dispatch + DMA latency dominate -> fused XLA.
    if B <= xla_batch_threshold:
        return _xla_forward(x, param_slab, n_actions, n_obs_pad)

    # Column-only pad (rare); padded columns hit zero W1 rows -> exact.
    if n_obs != n_obs_pad:
        x = jnp.pad(x, ((0, 0), (0, n_obs_pad - n_obs)))

    # Tile selection: single tile up to 2048 rows; otherwise split so the
    # grid has >= 2 "parallel" steps (v7x megacore) capped at 4096 rows/tile.
    # No row padding: the last grid step may be ragged (handled by Pallas).
    B8 = _ceil_to(B, 8)
    if B8 <= 2048:
        tb = B8
    else:
        tb = min(4096, _ceil_to(pl.cdiv(B8, 2), 256))
    grid = pl.cdiv(B, tb)

    kernel = functools.partial(
        _fused_actor_critic_kernel, n_obs_pad=n_obs_pad, out_lanes=out_lanes)

    def call(buffered_slab):
        if buffered_slab:
            # Constant index_map -> slab fetched once; single-buffer it.
            slab_spec = pl.BlockSpec(param_slab.shape, lambda i: (0, 0),
                                     pipeline_mode=pl.Buffered(1))
        else:
            slab_spec = pl.BlockSpec(param_slab.shape, lambda i: (0, 0))
        return pl.pallas_call(
            kernel,
            out_shape=jax.ShapeDtypeStruct((B, out_lanes), jnp.float32),
            grid=(grid,),
            in_specs=[
                pl.BlockSpec((tb, n_obs_pad), lambda i: (i, 0)),  # batch tile of x
                slab_spec,                                        # VMEM-resident weights
            ],
            out_specs=pl.BlockSpec((tb, out_lanes), lambda i: (i, 0)),
            compiler_params=pltpu.CompilerParams(
                dimension_semantics=("parallel",),                # batch split across TCs
            ),
        )(x, param_slab)

    try:
        out = call(buffered_slab=True)
    except Exception:
        # pipeline_mode=pl.Buffered(1) unsupported on this jax build -> default spec.
        out = call(buffered_slab=False)

    actor = out[:, :n_actions]
    critic = out[:, n_actions:n_actions + 1]
    return actor, critic


def init_params(key, n_observations, n_actions, hidden=HIDDEN):
    """Mimics PyTorch nn.Linear default init: U(-1/sqrt(fan_in), 1/sqrt(fan_in)).
    Weights stored pre-transposed as (in_dim, out_dim); biases as (1, out_dim)."""
    def linear(k, in_dim, out_dim):
        kw, kb = jax.random.split(k)
        bound = 1.0 / jnp.sqrt(jnp.float32(in_dim))
        w = jax.random.uniform(kw, (in_dim, out_dim), jnp.float32, -bound, bound)
        b = jax.random.uniform(kb, (1, out_dim), jnp.float32, -bound, bound)
        return w, b

    k1, k2, k3, k4 = jax.random.split(key, 4)
    aw1, ab1 = linear(k1, n_observations, hidden)   # actor.fc1
    aw2, ab2 = linear(k2, hidden, n_actions)        # actor.fc2
    cw1, cb1 = linear(k3, n_observations, hidden)   # critic.fc1
    cw2, cb2 = linear(k4, hidden, 1)                # critic.fc2
    return dict(aw1=aw1, ab1=ab1, aw2=aw2, ab2=ab2,
                cw1=cw1, cb1=cb1, cw2=cw2, cb2=cb2)


def reference_forward(x, p):
    h_a = jnp.maximum(x @ p["aw1"] + p["ab1"], 0.0)
    actor = h_a @ p["aw2"] + p["ab2"]
    h_c = jnp.maximum(x @ p["cw1"] + p["cb1"], 0.0)
    critic = h_c @ p["cw2"] + p["cb2"]
    return actor, critic


if __name__ == "__main__":
    key = jax.random.PRNGKey(0)
    k_param, k_x1, k_x2, k_x3 = jax.random.split(key, 4)

    n_observations = 8
    n_actions = 4

    params = init_params(k_param, n_observations, n_actions)
    slab = pack_params(params, n_observations)

    def check(x, actor, critic):
        a_ref, c_ref = reference_forward(x, params)
        assert actor.shape == (x.shape[0], n_actions)
        assert critic.shape == (x.shape[0], 1)
        assert jnp.allclose(actor, a_ref, atol=1e-5, rtol=1e-5)
        assert jnp.allclose(critic, c_ref, atol=1e-5, rtol=1e-5)

    # 1) Small batch forced through the Pallas kernel (single tile).
    x1 = jax.random.normal(k_x1, (8, n_observations), jnp.float32)
    a1, c1 = actor_critic_forward(x1, slab, n_actions, xla_batch_threshold=0)
    jax.block_until_ready((a1, c1))
    check(x1, a1, c1)

    # 2) Same small batch via the default tiny-batch XLA fast path.
    a1b, c1b = actor_critic_forward(x1, slab, n_actions)
    jax.block_until_ready((a1b, c1b))
    check(x1, a1b, c1b)

    # 3) PPO-rollout-style batch: Pallas single tile, ragged rows (300 of 304).
    x2 = jax.random.normal(k_x2, (300, n_observations), jnp.float32)
    a2, c2 = actor_critic_forward(x2, slab, n_actions)
    jax.block_until_ready((a2, c2))
    check(x2, a2, c2)

    # 4) Larger training batch: multi-step parallel grid + ragged last tile.
    x3 = jax.random.normal(k_x3, (2500, n_observations), jnp.float32)
    a3, c3 = actor_critic_forward(x3, slab, n_actions)
    jax.block_until_ready((a3, c3))
    check(x3, a3, c3)

    print("KERNEL_OK")
</pallas_src>

<mosaic_0001>
module attributes {stable_mosaic.version = 11 : i64} {
  func.func @_fused_actor_critic_kernel(%arg0: i32, %arg1: memref<8x8xf32, #tpu.memory_space<vmem>>, %arg2: memref<144x128xf32, #tpu.memory_space<vmem>>, %arg3: memref<8x8xf32, #tpu.memory_space<vmem>>) attributes {dimension_semantics = [#tpu.dimension_semantics<parallel>], iteration_bounds = array<i64: 1>, scalar_prefetch = 0 : i64, scratch_operands = 0 : i64, tpu.core_type = #tpu.core_type<tc>, window_params = [{transform_indices = @transform_0, window_bounds = array<i64: 8, 8>}, {pipeline_mode = #tpu.pipeline_mode<synchronous>, transform_indices = @transform_1, window_bounds = array<i64: 144, 128>}, {transform_indices = @transform_2, window_bounds = array<i64: 8, 8>}]} {
    %c0 = arith.constant 0 : index
    %c0_0 = arith.constant 0 : index
    %0 = vector.load %arg1[%c0, %c0_0] : memref<8x8xf32, #tpu.memory_space<vmem>>, vector<8x8xf32>
    %c0_1 = arith.constant 0 : index
    %c0_2 = arith.constant 0 : index
    %1 = vector.load %arg2[%c0_1, %c0_2] : memref<144x128xf32, #tpu.memory_space<vmem>>, vector<8x128xf32>
    %c8 = arith.constant 8 : index
    %c0_3 = arith.constant 0 : index
    %2 = vector.load %arg2[%c8, %c0_3] : memref<144x128xf32, #tpu.memory_space<vmem>>, vector<8x128xf32>
    %c16 = arith.constant 16 : index
    %c0_4 = arith.constant 0 : index
    %3 = vector.load %arg2[%c16, %c0_4] : memref<144x128xf32, #tpu.memory_space<vmem>>, vector<128x128xf32>
    %cst = arith.constant dense<0.000000e+00> : vector<8x128xf32>
    %4 = tpu.matmul %0, %1, %cst {dimension_numbers = #tpu.dot_dimension_numbers<[1], [0], [0], [1], [0, 0, 1, 1], [], []>} : vector<8x8xf32>, vector<8x128xf32>, vector<8x128xf32> -> vector<8x128xf32>
    %5 = vector.extract_strided_slice %2 {offsets = [0, 0], sizes = [1, 128], strides = [1, 1]} : vector<8x128xf32> to vector<1x128xf32>
    %6 = vector.broadcast %5 : vector<1x128xf32> to vector<8x128xf32>
    %7 = arith.addf %4, %6 : vector<8x128xf32>
    %cst_5 = arith.constant 0.000000e+00 : f32
    %8 = vector.broadcast %cst_5 : f32 to vector<8x128xf32>
    %9 = arith.maximumf %7, %8 : vector<8x128xf32>
    %cst_6 = arith.constant dense<0.000000e+00> : vector<8x128xf32>
    %10 = tpu.matmul %9, %3, %cst_6 {dimension_numbers = #tpu.dot_dimension_numbers<[1], [0], [0], [1], [0, 0, 1, 1], [], []>} : vector<8x128xf32>, vector<128x128xf32>, vector<8x128xf32> -> vector<8x128xf32>
    %11 = vector.extract_strided_slice %2 {offsets = [1, 0], sizes = [1, 128], strides = [1, 1]} : vector<8x128xf32> to vector<1x128xf32>
    %12 = vector.broadcast %11 : vector<1x128xf32> to vector<8x128xf32>
    %13 = arith.addf %10, %12 : vector<8x128xf32>
    %14 = vector.extract_strided_slice %13 {offsets = [0, 0], sizes = [8, 8], strides = [1, 1]} : vector<8x128xf32> to vector<8x8xf32>
    %c0_7 = arith.constant 0 : index
    %c0_8 = arith.constant 0 : index
    %15 = vector.load %arg3[%c0_7, %c0_8] : memref<8x8xf32, #tpu.memory_space<vmem>>, vector<8x8xf32>
    tpu.vector_store %arg3[%c0_7, %c0_8], %14 {strides = array<i32>} : memref<8x8xf32, #tpu.memory_space<vmem>>, vector<8x8xf32>,
    return
  }
  func.func @transform_0(%arg0: i32) -> (i32, i32) {
    %c0_i32 = arith.constant 0 : i32
    %c0_i32_0 = arith.constant 0 : i32
    return %arg0, %c0_i32 : i32, i32
  }
  func.func @transform_1(%arg0: i32) -> (i32, i32) {
    %c0_i32 = arith.constant 0 : i32
    %c0_i32_0 = arith.constant 0 : i32
    %c0_i32_1 = arith.constant 0 : i32
    return %c0_i32, %c0_i32_0 : i32, i32
  }
  func.func @transform_2(%arg0: i32) -> (i32, i32) {
    %c0_i32 = arith.constant 0 : i32
    %c0_i32_0 = arith.constant 0 : i32
    return %arg0, %c0_i32 : i32, i32
  }
}

module attributes {stable_mosaic.version = 11 : i64} {
  func.func @_fused_actor_critic_kernel(%arg0: i32, %arg1: memref<8x8xf32, #tpu.memory_space<vmem>>, %arg2: memref<144x128xf32, #tpu.memory_space<vmem>>, %arg3: memref<8x8xf32, #tpu.memory_space<vmem>>) attributes {dimension_semantics = [#tpu.dimension_semantics<parallel>], iteration_bounds = array<i64: 1>, scalar_prefetch = 0 : i64, scratch_operands = 0 : i64, tpu.core_type = #tpu.core_type<tc>, window_params = [{transform_indices = @transform_0, window_bounds = array<i64: 8, 8>}, {pipeline_mode = #tpu.pipeline_mode<synchronous>, transform_indices = @transform_1, window_bounds = array<i64: 144, 128>}, {transform_indices = @transform_2, window_bounds = array<i64: 8, 8>}]} {
    %c0 = arith.constant 0 : index
    %c0_0 = arith.constant 0 : index
    %0 = vector.load %arg1[%c0, %c0_0] : memref<8x8xf32, #tpu.memory_space<vmem>>, vector<8x8xf32>
    %c0_1 = arith.constant 0 : index
    %c0_2 = arith.constant 0 : index
    %1 = vector.load %arg2[%c0_1, %c0_2] : memref<144x128xf32, #tpu.memory_space<vmem>>, vector<8x128xf32>
    %c8 = arith.constant 8 : index
    %c0_3 = arith.constant 0 : index
    %2 = vector.load %arg2[%c8, %c0_3] : memref<144x128xf32, #tpu.memory_space<vmem>>, vector<8x128xf32>
    %c16 = arith.constant 16 : index
    %c0_4 = arith.constant 0 : index
    %3 = vector.load %arg2[%c16, %c0_4] : memref<144x128xf32, #tpu.memory_space<vmem>>, vector<128x128xf32>
    %cst = arith.constant dense<0.000000e+00> : vector<8x128xf32>
    %4 = tpu.matmul %0, %1, %cst {dimension_numbers = #tpu.dot_dimension_numbers<[1], [0], [0], [1], [0, 0, 1, 1], [], []>} : vector<8x8xf32>, vector<8x128xf32>, vector<8x128xf32> -> vector<8x128xf32>
    %5 = vector.extract_strided_slice %2 {offsets = [0, 0], sizes = [1, 128], strides = [1, 1]} : vector<8x128xf32> to vector<1x128xf32>
    %6 = vector.broadcast %5 : vector<1x128xf32> to vector<8x128xf32>
    %7 = arith.addf %4, %6 : vector<8x128xf32>
    %cst_5 = arith.constant 0.000000e+00 : f32
    %8 = vector.broadcast %cst_5 : f32 to vector<8x128xf32>
    %9 = arith.maximumf %7, %8 : vector<8x128xf32>
    %cst_6 = arith.constant dense<0.000000e+00> : vector<8x128xf32>
    %10 = tpu.matmul %9, %3, %cst_6 {dimension_numbers = #tpu.dot_dimension_numbers<[1], [0], [0], [1], [0, 0, 1, 1], [], []>} : vector<8x128xf32>, vector<128x128xf32>, vector<8x128xf32> -> vector<8x128xf32>
    %11 = vector.extract_strided_slice %2 {offsets = [1, 0], sizes = [1, 128], strides = [1, 1]} : vector<8x128xf32> to vector<1x128xf32>
    %12 = vector.broadcast %11 : vector<1x128xf32> to vector<8x128xf32>
    %13 = arith.addf %10, %12 : vector<8x128xf32>
    %14 = vector.extract_strided_slice %13 {offsets = [0, 0], sizes = [8, 8], strides = [1, 1]} : vector<8x128xf32> to vector<8x8xf32>
    %c0_7 = arith.constant 0 : index
    %c0_8 = arith.constant 0 : index
    %15 = vector.load %arg3[%c0_7, %c0_8] : memref<8x8xf32, #tpu.memory_space<vmem>>, vector<8x8xf32>
    tpu.vector_store %arg3[%c0_7, %c0_8], %14 {strides = array<i32>} : memref<8x8xf32, #tpu.memory_space<vmem>>, vector<8x8xf32>,
    return
  }
  func.func @transform_0(%arg0: i32) -> (i32, i32) {
    %c0_i32 = arith.constant 0 : i32
    %c0_i32_0 = arith.constant 0 : i32
    return %arg0, %c0_i32 : i32, i32
  }
  func.func @transform_1(%arg0: i32) -> (i32, i32) {
    %c0_i32 = arith.constant 0 : i32
    %c0_i32_0 = arith.constant 0 : i32
    %c0_i32_1 = arith.constant 0 : i32
    return %c0_i32, %c0_i32_0 : i32, i32
  }
  func.func @transform_2(%arg0: i32) -> (i32, i32) {
    %c0_i32 = arith.constant 0 : i32
    %c0_i32_0 = arith.constant 0 : i32
    return %arg0, %c0_i32 : i32, i32
  }
}

</mosaic_0001>

<llo_original>
// kernel: tpu_custom_call.1
$region0: #{tpu_custom_call.1}
  #allocation0 [shape = 'u32[]', space=smem, size = 0x4, offset = 0x4, fixed_abs, tag = 'smem constant byte address 0x4 - core index']
  #allocation1 [shape = 'u32[144,128]{1,0:T(1,128)}', space=vmem, size = 0x12000, scoped, tag = 'internal scratch']
  %s0 = inlined_call_operand.hbm [shape: f32[8,8], index: 0, kind: input, shape index: {}]
  %s1 = inlined_call_operand.hbm [shape: f32[144,128], index: 1, kind: input, shape index: {}]
  %s2 = inlined_call_operand.hbm [shape: f32[8,8], index: 2, kind: output, shape index: {}]
  %s3 = sld [smem:[#allocation0]]
  $region26: #{tpu_custom_call.1} parent=0
    _
  %s5 = ssub.s32 1, %s3
  %s6 = scalar_select 0, %s5, %s3
  $region1: #{tpu_custom_call.1} parent=0
    #allocation2 [shape = 'u8[4096]{0}', space=vmem, size = 0x1000, scoped, tag = 'input window, operand 0, single buffered']
    #allocation3 [shape = 's32[1]{0}', space=sflag, size = 0x4, scoped, tag = 'scoped memory for tpu_custom_call.1']
    #allocation4 [shape = 's32[1]{0}', space=sflag, size = 0x4, scoped, tag = 'scoped memory for tpu_custom_call.1']
    #allocation5 [shape = 'u8[73728]{0}', space=vmem, size = 0x12000, scoped, tag = 'input window, operand 1, single buffered']
    #allocation6 [shape = 's32[1]{0}', space=sflag, size = 0x4, scoped, tag = 'scoped memory for tpu_custom_call.1']
    #allocation7 [shape = 'u8[4096]{0}', space=vmem, size = 0x1000, scoped, tag = 'output window, operand 0, single buffered']
    %7 = vsyncpa [#allocation3], 0
    %8 = vsyncpa [#allocation6], 0
    %9 = vsyncpa [#allocation4], 0
    // Predicated region
    $region2: #{tpu_custom_call.1} parent=1 // pred_check
      _
    $region3: #{tpu_custom_call.1} parent=1 // pred_check_branch
      %11 = sbr.rel (0) target = $region5
    $region4: #{tpu_custom_call.1} parent=1 // pred_region
      %s13 = ssub.s32 128, 128
      %14 = vsyncadd [#allocation3], %s13
      %s16 = sshll.u32 [#allocation2], 4
      %s17 = int_to_ptr.vmem [resolvable:$true] %s16
      %19 = dma.hbm_to_vmem [thread:$0]  %s0, 128, %s17, [#allocation3]
    $region5: #{tpu_custom_call.1} parent=1 // pred_fallthru
      _
    // Predicated region
    $region6: #{tpu_custom_call.1} parent=1 // pred_check
      _
    $region7: #{tpu_custom_call.1} parent=1 // pred_check_branch
      %21 = sbr.rel (0) target = $region9
    $region8: #{tpu_custom_call.1} parent=1 // pred_region
      %s23 = ssub.s32 2304, 2304
      %24 = vsyncadd [#allocation6], %s23
      %s25 = sshll.u32 [#allocation5], 4
      %s26 = int_to_ptr.vmem [resolvable:$true] %s25
      %31 = dma.hbm_to_vmem [thread:$0]  %s1, 2304, %s26, [#allocation6], 128, 128, 8
    $region9: #{tpu_custom_call.1} parent=1 // pred_fallthru
      _
    // Predicated region
    $region10: #{tpu_custom_call.1} parent=1 // pred_check
      _
    $region11: #{tpu_custom_call.1} parent=1 // pred_check_branch
      %33 = sbr.rel (0) target = $region13
    $region12: #{tpu_custom_call.1} parent=1 // pred_region
      %34 = dma.done [#allocation3], 128
    $region13: #{tpu_custom_call.1} parent=1 // pred_fallthru
      _
    // Predicated region
    $region14: #{tpu_custom_call.1} parent=1 // pred_check
      _
    $region15: #{tpu_custom_call.1} parent=1 // pred_check_branch
      %36 = sbr.rel (0) target = $region17
    $region16: #{tpu_custom_call.1} parent=1 // pred_region
      %37 = dma.done [#allocation6], 2304
    $region17: #{tpu_custom_call.1} parent=1 // pred_fallthru
      _
    %v38 = vld [vmem:[#allocation2] sm:$0xff]
    %v39 = vld [vmem:[#allocation5] sm:$0xff]
    %v40 = vld [vmem:[#allocation5 + $0x8] sm:$0xff]
    %v41 = vld [vmem:[#allocation5 + $0x10] sm:$0xff]
    %v42 = vld [vmem:[#allocation5 + $0x18] sm:$0xff]
    %v43 = vld [vmem:[#allocation5 + $0x20] sm:$0xff]
    %v44 = vld [vmem:[#allocation5 + $0x28] sm:$0xff]
    %v45 = vld [vmem:[#allocation5 + $0x30] sm:$0xff]
    %v46 = vld [vmem:[#allocation5 + $0x38] sm:$0xff]
    %v47 = vld [vmem:[#allocation5 + $0x40] sm:$0xff]
    %v48 = vld [vmem:[#allocation5 + $0x48] sm:$0xff]
    %v49 = vld [vmem:[#allocation5 + $0x50] sm:$0xff]
    %v50 = vld [vmem:[#allocation5 + $0x58] sm:$0xff]
    %v51 = vld [vmem:[#allocation5 + $0x60] sm:$0xff]
    %v52 = vld [vmem:[#allocation5 + $0x68] sm:$0xff]
    %v53 = vld [vmem:[#allocation5 + $0x70] sm:$0xff]
    %v54 = vld [vmem:[#allocation5 + $0x78] sm:$0xff]
    %v55 = vld [vmem:[#allocation5 + $0x80] sm:$0xff]
    %v56 = vld [vmem:[#allocation5 + $0x88] sm:$0xff]
    %v57 = vlaneseq
    %v58 = vshrl.u32 %v57, 7
    %v59 = vsub.s32 0, %v58
    %v60 = vrot.slane %v40, %v59
    %vm61 = vcmask 64512
    %v63 = vsel %vm61, %v38, 0
    %65 = vmatprep.subr.mxu0 0.0
    %66 = vmatpush1.msra.mxu0 %v39
    %67 = vmatprep.subr.mxu0 0.0
    %68 = vmatpush1.msra.mxu0 0.0
    %69 = vmatprep.subr.mxu0 0.0
    %70 = vmatpush1.msra.mxu0 0.0
    %71 = vmatprep.subr.mxu0 0.0
    %72 = vmatpush1.msra.mxu0 0.0
    %73 = vmatprep.subr.mxu0 0.0
    %74 = vmatpush1.msra.mxu0 0.0
    %75 = vmatprep.subr.mxu0 0.0
    %76 = vmatpush1.msra.mxu0 0.0
    %77 = vmatprep.subr.mxu0 0.0
    %78 = vmatpush1.msra.mxu0 0.0
    %79 = vmatprep.subr.mxu0 0.0
    %80 = vmatpush1.msra.mxu0 0.0
    %81 = vmatprep.subr.mxu0 0.0
    %82 = vmatpush1.msra.mxu0 0.0
    %83 = vmatprep.subr.mxu0 0.0
    %84 = vmatpush1.msra.mxu0 0.0
    %85 = vmatprep.subr.mxu0 0.0
    %86 = vmatpush1.msra.mxu0 0.0
    %87 = vmatprep.subr.mxu0 0.0
    %88 = vmatpush1.msra.mxu0 0.0
    %89 = vmatprep.subr.mxu0 0.0
    %90 = vmatpush1.msra.mxu0 0.0
    %91 = vmatprep.subr.mxu0 0.0
    %92 = vmatpush1.msra.mxu0 0.0
    %93 = vmatprep.subr.mxu0 0.0
    %94 = vmatpush1.msra.mxu0 0.0
    %95 = vmatprep.subr.mxu0 0.0
    %96 = vmatpush1.msra.mxu0 0.0
    %97 = vmatprep.subr.mxu0 0.0
    %98 = vmatpush1.msra.mxu0 0.0
    %99 = vmatprep.subr.mxu0 0.0
    %100 = vmatpush1.msra.mxu0 0.0
    %101 = vmatprep.subr.mxu0 0.0
    %102 = vmatpush1.msra.mxu0 0.0
    %103 = vmatprep.subr.mxu0 0.0
    %104 = vmatpush1.msra.mxu0 0.0
    %105 = vmatprep.subr.mxu0 0.0
    %106 = vmatpush1.msra.mxu0 0.0
    %107 = vmatprep.subr.mxu0 0.0
    %108 = vmatpush1.msra.mxu0 0.0
    %109 = vmatprep.subr.mxu0 0.0
    %110 = vmatpush1.msra.mxu0 0.0
    %111 = vmatprep.subr.mxu0 0.0
    %112 = vmatpush1.msra.mxu0 0.0
    %113 = vmatprep.subr.mxu0 0.0
    %114 = vmatpush1.msra.mxu0 0.0
    %115 = vmatprep.subr.mxu0 0.0
    %116 = vmatpush1.msra.mxu0 0.0
    %117 = vmatprep.subr.mxu0 0.0
    %118 = vmatpush1.msra.mxu0 0.0
    %119 = vmatprep.subr.mxu0 0.0
    %120 = vmatpush1.msra.mxu0 0.0
    %121 = vmatprep.subr.mxu0 0.0
    %122 = vmatpush1.msra.mxu0 0.0
    %123 = vmatprep.subr.mxu0 0.0
    %124 = vmatpush1.msra.mxu0 0.0
    %125 = vmatprep.subr.mxu0 0.0
    %126 = vmatpush1.msra.mxu0 0.0
    %127 = vmatprep.subr.mxu0 0.0
    %128 = vmatpush1.msra.mxu0 0.0
    %129 = vmatprep.mubr.f32.mxu0 0.0
    %130 = vmatmul.mubr.f32.gmra.mrb[0].mxu0 %v63
    %v131 = vpop.f32.mrb[0].mxu0
    %v132 = vadd.f32 %v60, %v131
    %v133 = vpop.f32.mrb[0].mxu0
    %134 = vdwg.mxu0
    %v135 = vmax.f32 %v132, 0.0
    %v136 = vlaneseq
    %v137 = vshrl.u32 %v136, 7
    %v138 = vsub.s32 1, %v137
    %v139 = vrot.slane %v40, %v138
    %140 = vmatprep.subr.mxu0 0.0
    %141 = vmatpush1.msra.mxu0 %v41
    %142 = vmatprep.subr.mxu0 0.0
    %143 = vmatpush1.msra.mxu0 %v42
    %144 = vmatprep.subr.mxu0 0.0
    %145 = vmatpush1.msra.mxu0 %v43
    %146 = vmatprep.subr.mxu0 0.0
    %147 = vmatpush1.msra.mxu0 %v44
    %148 = vmatprep.subr.mxu0 0.0
    %149 = vmatpush1.msra.mxu0 %v45
    %150 = vmatprep.subr.mxu0 0.0
    %151 = vmatpush1.msra.mxu0 %v46
    %152 = vmatprep.subr.mxu0 0.0
    %153 = vmatpush1.msra.mxu0 %v47
    %154 = vmatprep.subr.mxu0 0.0
    %155 = vmatpush1.msra.mxu0 %v48
    %156 = vmatprep.subr.mxu0 0.0
    %157 = vmatpush1.msra.mxu0 %v49
    %158 = vmatprep.subr.mxu0 0.0
    %159 = vmatpush1.msra.mxu0 %v50
    %160 = vmatprep.subr.mxu0 0.0
    %161 = vmatpush1.msra.mxu0 %v51
    %162 = vmatprep.subr.mxu0 0.0
    %163 = vmatpush1.msra.mxu0 %v52
    %164 = vmatprep.subr.mxu0 0.0
    %165 = vmatpush1.msra.mxu0 %v53
    %166 = vmatprep.subr.mxu0 0.0
    %167 = vmatpush1.msra.mxu0 %v54
    %168 = vmatprep.subr.mxu0 0.0
    %169 = vmatpush1.msra.mxu0 %v55
    %170 = vmatprep.subr.mxu0 0.0
    %171 = vmatpush1.msra.mxu0 %v56
    %172 = vmatprep.subr.mxu0 0.0
    %173 = vmatpush1.msra.mxu0 0.0
    %174 = vmatprep.subr.mxu0 0.0
    %175 = vmatpush1.msra.mxu0 0.0
    %176 = vmatprep.subr.mxu0 0.0
    %177 = vmatpush1.msra.mxu0 0.0
    %178 = vmatprep.subr.mxu0 0.0
    %179 = vmatpush1.msra.mxu0 0.0
    %180 = vmatprep.subr.mxu0 0.0
    %181 = vmatpush1.msra.mxu0 0.0
    %182 = vmatprep.subr.mxu0 0.0
    %183 = vmatpush1.msra.mxu0 0.0
    %184 = vmatprep.subr.mxu0 0.0
    %185 = vmatpush1.msra.mxu0 0.0
    %186 = vmatprep.subr.mxu0 0.0
    %187 = vmatpush1.msra.mxu0 0.0
    %188 = vmatprep.subr.mxu0 0.0
    %189 = vmatpush1.msra.mxu0 0.0
    %190 = vmatprep.subr.mxu0 0.0
    %191 = vmatpush1.msra.mxu0 0.0
    %192 = vmatprep.subr.mxu0 0.0
    %193 = vmatpush1.msra.mxu0 0.0
    %194 = vmatprep.subr.mxu0 0.0
    %195 = vmatpush1.msra.mxu0 0.0
    %196 = vmatprep.subr.mxu0 0.0
    %197 = vmatpush1.msra.mxu0 0.0
    %198 = vmatprep.subr.mxu0 0.0
    %199 = vmatpush1.msra.mxu0 0.0
    %200 = vmatprep.subr.mxu0 0.0
    %201 = vmatpush1.msra.mxu0 0.0
    %202 = vmatprep.subr.mxu0 0.0
    %203 = vmatpush1.msra.mxu0 0.0
    %204 = vmatprep.mubr.f32.mxu0 0.0
    %205 = vmatmul.mubr.f32.gmra.mrb[0].mxu0 %v135
    %v206 = vpop.f32.mrb[0].mxu0
    %v207 = vadd.f32 %v139, %v206
    %v208 = vpop.f32.mrb[0].mxu0
    %209 = vdwg.mxu0
    %210 = vst.msk [vmem:[#allocation7] sm:$0xff] %vm61, %v207
    // Predicated region
    $region18: #{tpu_custom_call.1} parent=1 // pred_check
      _
    $region19: #{tpu_custom_call.1} parent=1 // pred_check_branch
      %212 = sbr.rel (0) target = $region21
    $region20: #{tpu_custom_call.1} parent=1 // pred_region
      %s214 = ssub.s32 128, 128
      %215 = vsyncadd [#allocation4], %s214
      %s217 = sshll.u32 [#allocation7], 4
      %s218 = int_to_ptr.vmem [resolvable:$true] %s217
      %220 = dma.vmem_to_hbm [thread:$0]  %s218, 128, %s2, [#allocation4]
    $region21: #{tpu_custom_call.1} parent=1 // pred_fallthru
      _
    // Predicated region
    $region22: #{tpu_custom_call.1} parent=1 // pred_check
      _
    $region23: #{tpu_custom_call.1} parent=1 // pred_check_branch
      %222 = sbr.rel (0) target = $region25
    $region24: #{tpu_custom_call.1} parent=1 // pred_region
      %223 = dma.done [#allocation4], 128
    $region25: #{tpu_custom_call.1} parent=1 // pred_fallthru
      _
    %224 = vsyncpa [#allocation3], 1
    %225 = vsyncpa [#allocation6], 1
    %226 = vsyncpa [#allocation4], 1

// kernel: tpu_custom_call.1
$region0: #{tpu_custom_call.1}
  #allocation0 [shape = 'u32[]', space=smem, size = 0x4, offset = 0x4, fixed_abs, tag = 'smem constant byte address 0x4 - core index']
  #allocation1 [shape = 'u32[144,128]{1,0:T(1,128)}', space=vmem, size = 0x12000, scoped, tag = 'internal scratch']
  %s0 = inlined_call_operand.hbm [shape: f32[8,8], index: 0, kind: input, shape index: {}]
  %s1 = inlined_call_operand.hbm [shape: f32[144,128], index: 1, kind: input, shape index: {}]
  %s2 = inlined_call_operand.hbm [shape: f32[8,8], index: 2, kind: output, shape index: {}]
  %s3 = sld [smem:[#allocation0]]
  $region26: #{tpu_custom_call.1} parent=0
    _
  %s5 = ssub.s32 1, %s3
  %s6 = scalar_select 0, %s5, %s3
  $region1: #{tpu_custom_call.1} parent=0
    #allocation2 [shape = 'u8[4096]{0}', space=vmem, size = 0x1000, scoped, tag = 'input window, operand 0, single buffered']
    #allocation3 [shape = 's32[1]{0}', space=sflag, size = 0x4, scoped, tag = 'scoped memory for tpu_custom_call.1']
    #allocation4 [shape = 's32[1]{0}', space=sflag, size = 0x4, scoped, tag = 'scoped memory for tpu_custom_call.1']
    #allocation5 [shape = 'u8[73728]{0}', space=vmem, size = 0x12000, scoped, tag = 'input window, operand 1, single buffered']
    #allocation6 [shape = 's32[1]{0}', space=sflag, size = 0x4, scoped, tag = 'scoped memory for tpu_custom_call.1']
    #allocation7 [shape = 'u8[4096]{0}', space=vmem, size = 0x1000, scoped, tag = 'output window, operand 0, single buffered']
    %7 = vsyncpa [#allocation3], 0
    %8 = vsyncpa [#allocation6], 0
    %9 = vsyncpa [#allocation4], 0
    // Predicated region
    $region2: #{tpu_custom_call.1} parent=1 // pred_check
      _
    $region3: #{tpu_custom_call.1} parent=1 // pred_check_branch
      %11 = sbr.rel (0) target = $region5
    $region4: #{tpu_custom_call.1} parent=1 // pred_region
      %s13 = ssub.s32 128, 128
      %14 = vsyncadd [#allocation3], %s13
      %s16 = sshll.u32 [#allocation2], 4
      %s17 = int_to_ptr.vmem [resolvable:$true] %s16
      %19 = dma.hbm_to_vmem [thread:$0]  %s0, 128, %s17, [#allocation3]
    $region5: #{tpu_custom_call.1} parent=1 // pred_fallthru
      _
    // Predicated region
    $region6: #{tpu_custom_call.1} parent=1 // pred_check
      _
    $region7: #{tpu_custom_call.1} parent=1 // pred_check_branch
      %21 = sbr.rel (0) target = $region9
    $region8: #{tpu_custom_call.1} parent=1 // pred_region
      %s23 = ssub.s32 2304, 2304
      %24 = vsyncadd [#allocation6], %s23
      %s25 = sshll.u32 [#allocation5], 4
      %s26 = int_to_ptr.vmem [resolvable:$true] %s25
      %31 = dma.hbm_to_vmem [thread:$0]  %s1, 2304, %s26, [#allocation6], 128, 128, 8
    $region9: #{tpu_custom_call.1} parent=1 // pred_fallthru
      _
    // Predicated region
    $region10: #{tpu_custom_call.1} parent=1 // pred_check
      _
    $region11: #{tpu_custom_call.1} parent=1 // pred_check_branch
      %33 = sbr.rel (0) target = $region13
    $region12: #{tpu_custom_call.1} parent=1 // pred_region
      %34 = dma.done [#allocation3], 128
    $region13: #{tpu_custom_call.1} parent=1 // pred_fallthru
      _
    // Predicated region
    $region14: #{tpu_custom_call.1} parent=1 // pred_check
      _
    $region15: #{tpu_custom_call.1} parent=1 // pred_check_branch
      %36 = sbr.rel (0) target = $region17
    $region16: #{tpu_custom_call.1} parent=1 // pred_region
      %37 = dma.done [#allocation6], 2304
    $region17: #{tpu_custom_call.1} parent=1 // pred_fallthru
      _
    %v38 = vld [vmem:[#allocation2] sm:$0xff]
    %v39 = vld [vmem:[#allocation5] sm:$0xff]
    %v40 = vld [vmem:[#allocation5 + $0x8] sm:$0xff]
    %v41 = vld [vmem:[#allocation5 + $0x10] sm:$0xff]
    %v42 = vld [vmem:[#allocation5 + $0x18] sm:$0xff]
    %v43 = vld [vmem:[#allocation5 + $0x20] sm:$0xff]
    %v44 = vld [vmem:[#allocation5 + $0x28] sm:$0xff]
    %v45 = vld [vmem:[#allocation5 + $0x30] sm:$0xff]
    %v46 = vld [vmem:[#allocation5 + $0x38] sm:$0xff]
    %v47 = vld [vmem:[#allocation5 + $0x40] sm:$0xff]
    %v48 = vld [vmem:[#allocation5 + $0x48] sm:$0xff]
    %v49 = vld [vmem:[#allocation5 + $0x50] sm:$0xff]
    %v50 = vld [vmem:[#allocation5 + $0x58] sm:$0xff]
    %v51 = vld [vmem:[#allocation5 + $0x60] sm:$0xff]
    %v52 = vld [vmem:[#allocation5 + $0x68] sm:$0xff]
    %v53 = vld [vmem:[#allocation5 + $0x70] sm:$0xff]
    %v54 = vld [vmem:[#allocation5 + $0x78] sm:$0xff]
    %v55 = vld [vmem:[#allocation5 + $0x80] sm:$0xff]
    %v56 = vld [vmem:[#allocation5 + $0x88] sm:$0xff]
    %v57 = vlaneseq
    %v58 = vshrl.u32 %v57, 7
    %v59 = vsub.s32 0, %v58
    %v60 = vrot.slane %v40, %v59
    %vm61 = vcmask 64512
    %v63 = vsel %vm61, %v38, 0
    %65 = vmatprep.subr.mxu0 0.0
    %66 = vmatpush1.msra.mxu0 %v39
    %67 = vmatprep.subr.mxu0 0.0
    %68 = vmatpush1.msra.mxu0 0.0
    %69 = vmatprep.subr.mxu0 0.0
    %70 = vmatpush1.msra.mxu0 0.0
    %71 = vmatprep.subr.mxu0 0.0
    %72 = vmatpush1.msra.mxu0 0.0
    %73 = vmatprep.subr.mxu0 0.0
    %74 = vmatpush1.msra.mxu0 0.0
    %75 = vmatprep.subr.mxu0 0.0
    %76 = vmatpush1.msra.mxu0 0.0
    %77 = vmatprep.subr.mxu0 0.0
    %78 = vmatpush1.msra.mxu0 0.0
    %79 = vmatprep.subr.mxu0 0.0
    %80 = vmatpush1.msra.mxu0 0.0
    %81 = vmatprep.subr.mxu0 0.0
    %82 = vmatpush1.msra.mxu0 0.0
    %83 = vmatprep.subr.mxu0 0.0
    %84 = vmatpush1.msra.mxu0 0.0
    %85 = vmatprep.subr.mxu0 0.0
    %86 = vmatpush1.msra.mxu0 0.0
    %87 = vmatprep.subr.mxu0 0.0
    %88 = vmatpush1.msra.mxu0 0.0
    %89 = vmatprep.subr.mxu0 0.0
    %90 = vmatpush1.msra.mxu0 0.0
    %91 = vmatprep.subr.mxu0 0.0
    %92 = vmatpush1.msra.mxu0 0.0
    %93 = vmatprep.subr.mxu0 0.0
    %94 = vmatpush1.msra.mxu0 0.0
    %95 = vmatprep.subr.mxu0 0.0
    %96 = vmatpush1.msra.mxu0 0.0
    %97 = vmatprep.subr.mxu0 0.0
    %98 = vmatpush1.msra.mxu0 0.0
    %99 = vmatprep.subr.mxu0 0.0
    %100 = vmatpush1.msra.mxu0 0.0
    %101 = vmatprep.subr.mxu0 0.0
    %102 = vmatpush1.msra.mxu0 0.0
    %103 = vmatprep.subr.mxu0 0.0
    %104 = vmatpush1.msra.mxu0 0.0
    %105 = vmatprep.subr.mxu0 0.0
    %106 = vmatpush1.msra.mxu0 0.0
    %107 = vmatprep.subr.mxu0 0.0
    %108 = vmatpush1.msra.mxu0 0.0
    %109 = vmatprep.subr.mxu0 0.0
    %110 = vmatpush1.msra.mxu0 0.0
    %111 = vmatprep.subr.mxu0 0.0
    %112 = vmatpush1.msra.mxu0 0.0
    %113 = vmatprep.subr.mxu0 0.0
    %114 = vmatpush1.msra.mxu0 0.0
    %115 = vmatprep.subr.mxu0 0.0
    %116 = vmatpush1.msra.mxu0 0.0
    %117 = vmatprep.subr.mxu0 0.0
    %118 = vmatpush1.msra.mxu0 0.0
    %119 = vmatprep.subr.mxu0 0.0
    %120 = vmatpush1.msra.mxu0 0.0
    %121 = vmatprep.subr.mxu0 0.0
    %122 = vmatpush1.msra.mxu0 0.0
    %123 = vmatprep.subr.mxu0 0.0
    %124 = vmatpush1.msra.mxu0 0.0
    %125 = vmatprep.subr.mxu0 0.0
    %126 = vmatpush1.msra.mxu0 0.0
    %127 = vmatprep.subr.mxu0 0.0
    %128 = vmatpush1.msra.mxu0 0.0
    %129 = vmatprep.mubr.f32.mxu0 0.0
    %130 = vmatmul.mubr.f32.gmra.mrb[0].mxu0 %v63
    %v131 = vpop.f32.mrb[0].mxu0
    %v132 = vadd.f32 %v60, %v131
    %v133 = vpop.f32.mrb[0].mxu0
    %134 = vdwg.mxu0
    %v135 = vmax.f32 %v132, 0.0
    %v136 = vlaneseq
    %v137 = vshrl.u32 %v136, 7
    %v138 = vsub.s32 1, %v137
    %v139 = vrot.slane %v40, %v138
    %140 = vmatprep.subr.mxu0 0.0
    %141 = vmatpush1.msra.mxu0 %v41
    %142 = vmatprep.subr.mxu0 0.0
    %143 = vmatpush1.msra.mxu0 %v42
    %144 = vmatprep.subr.mxu0 0.0
    %145 = vmatpush1.msra.mxu0 %v43
    %146 = vmatprep.subr.mxu0 0.0
    %147 = vmatpush1.msra.mxu0 %v44
    %148 = vmatprep.subr.mxu0 0.0
    %149 = vmatpush1.msra.mxu0 %v45
    %150 = vmatprep.subr.mxu0 0.0
    %151 = vmatpush1.msra.mxu0 %v46
    %152 = vmatprep.subr.mxu0 0.0
    %153 = vmatpush1.msra.mxu0 %v47
    %154 = vmatprep.subr.mxu0 0.0
    %155 = vmatpush1.msra.mxu0 %v48
    %156 = vmatprep.subr.mxu0 0.0
    %157 = vmatpush1.msra.mxu0 %v49
    %158 = vmatprep.subr.mxu0 0.0
    %159 = vmatpush1.msra.mxu0 %v50
    %160 = vmatprep.subr.mxu0 0.0
    %161 = vmatpush1.msra.mxu0 %v51
    %162 = vmatprep.subr.mxu0 0.0
    %163 = vmatpush1.msra.mxu0 %v52
    %164 = vmatprep.subr.mxu0 0.0
    %165 = vmatpush1.msra.mxu0 %v53
    %166 = vmatprep.subr.mxu0 0.0
    %167 = vmatpush1.msra.mxu0 %v54
    %168 = vmatprep.subr.mxu0 0.0
    %169 = vmatpush1.msra.mxu0 %v55
    %170 = vmatprep.subr.mxu0 0.0
    %171 = vmatpush1.msra.mxu0 %v56
    %172 = vmatprep.subr.mxu0 0.0
    %173 = vmatpush1.msra.mxu0 0.0
    %174 = vmatprep.subr.mxu0 0.0
    %175 = vmatpush1.msra.mxu0 0.0
    %176 = vmatprep.subr.mxu0 0.0
    %177 = vmatpush1.msra.mxu0 0.0
    %178 = vmatprep.subr.mxu0 0.0
    %179 = vmatpush1.msra.mxu0 0.0
    %180 = vmatprep.subr.mxu0 0.0
    %181 = vmatpush1.msra.mxu0 0.0
    %182 = vmatprep.subr.mxu0 0.0
    %183 = vmatpush1.msra.mxu0 0.0
    %184 = vmatprep.subr.mxu0 0.0
    %185 = vmatpush1.msra.mxu0 0.0
    %186 = vmatprep.subr.mxu0 0.0
    %187 = vmatpush1.msra.mxu0 0.0
    %188 = vmatprep.subr.mxu0 0.0
    %189 = vmatpush1.msra.mxu0 0.0
    %190 = vmatprep.subr.mxu0 0.0
    %191 = vmatpush1.msra.mxu0 0.0
    %192 = vmatprep.subr.mxu0 0.0
    %193 = vmatpush1.msra.mxu0 0.0
    %194 = vmatprep.subr.mxu0 0.0
    %195 = vmatpush1.msra.mxu0 0.0
    %196 = vmatprep.subr.mxu0 0.0
    %197 = vmatpush1.msra.mxu0 0.0
    %198 = vmatprep.subr.mxu0 0.0
    %199 = vmatpush1.msra.mxu0 0.0
    %200 = vmatprep.subr.mxu0 0.0
    %201 = vmatpush1.msra.mxu0 0.0
    %202 = vmatprep.subr.mxu0 0.0
    %203 = vmatpush1.msra.mxu0 0.0
    %204 = vmatprep.mubr.f32.mxu0 0.0
    %205 = vmatmul.mubr.f32.gmra.mrb[0].mxu0 %v135
    %v206 = vpop.f32.mrb[0].mxu0
    %v207 = vadd.f32 %v139, %v206
    %v208 = vpop.f32.mrb[0].mxu0
    %209 = vdwg.mxu0
    %210 = vst.msk [vmem:[#allocation7] sm:$0xff] %vm61, %v207
    // Predicated region
    $region18: #{tpu_custom_call.1} parent=1 // pred_check
      _
    $region19: #{tpu_custom_call.1} parent=1 // pred_check_branch
      %212 = sbr.rel (0) target = $region21
    $region20: #{tpu_custom_call.1} parent=1 // pred_region
      %s214 = ssub.s32 128, 128
      %215 = vsyncadd [#allocation4], %s214
      %s217 = sshll.u32 [#allocation7], 4
      %s218 = int_to_ptr.vmem [resolvable:$true] %s217
      %220 = dma.vmem_to_hbm [thread:$0]  %s218, 128, %s2, [#allocation4]
    $region21: #{tpu_custom_call.1} parent=1 // pred_fallthru
      _
    // Predicated region
    $region22: #{tpu_custom_call.1} parent=1 // pred_check
      _
    $region23: #{tpu_custom_call.1} parent=1 // pred_check_branch
      %222 = sbr.rel (0) target = $region25
    $region24: #{tpu_custom_call.1} parent=1 // pred_region
      %223 = dma.done [#allocation4], 128
    $region25: #{tpu_custom_call.1} parent=1 // pred_fallthru
      _
    %224 = vsyncpa [#allocation3], 1
    %225 = vsyncpa [#allocation6], 1
    %226 = vsyncpa [#allocation4], 1

</llo_original>
